<compile_context>
chip_gen: v6e
topology: v6e:2x2x1
jax: 0.10.0
libtpu: 0.0.40
codegen_flags: <defaults>
</compile_context>

<pallas_src>
import functools

import jax
import jax.numpy as jnp
from jax.experimental import pallas as pl
from jax.experimental.pallas import tpu as pltpu


def _adaptive_bins(in_size: int, out_size: int):
    """Static PyTorch-style adaptive pooling bin boundaries."""
    bins = []
    for i in range(out_size):
        start = (i * in_size) // out_size
        end = -((-(i + 1) * in_size) // out_size)  # ceil((i+1)*in/out)
        bins.append((start, end))
    return bins


def _concat_pool_kernel(x_ref, out_ref, *, H, W, oh, ow):
    """One grid step: input block (Bt, Ct, H*W) -> output block (Bt, 2*oh*ow, Ct).

    Output rows [0, oh*ow) hold the averages, rows [oh*ow, 2*oh*ow) the maxima,
    both with channels on the lane axis.
    """
    x = x_ref[...]                                   # (Bt, Ct, HW), input dtype
    HW = H * W
    K = oh * ow

    if oh == 1 and ow == 1:
        # Global pool: one dense lane reduce, no per-window work.
        s = jnp.sum(x, axis=-1, dtype=jnp.float32)               # (Bt, Ct) f32
        m = jnp.max(x, axis=-1)                                  # (Bt, Ct)
        out_ref[:, 0, :] = (s * (1.0 / HW)).astype(out_ref.dtype)
        out_ref[:, 1, :] = m.astype(out_ref.dtype)
    else:
        # General adaptive pooling via masked full-row reductions over the flat
        # H*W axis: no non-(8,128)-aligned slice copies, no stack relayout.
        idx = jax.lax.broadcasted_iota(jnp.int32, (1, 1, HW), 2)
        row = idx // W
        col = idx % W
        if jnp.issubdtype(x.dtype, jnp.floating):
            neg = float("-inf")
        else:
            neg = jnp.iinfo(x.dtype).min

        k = 0
        for (h0, h1) in _adaptive_bins(H, oh):
            for (w0, w1) in _adaptive_bins(W, ow):
                mask = (row >= h0) & (row < h1) & (col >= w0) & (col < w1)
                inv_cnt = 1.0 / ((h1 - h0) * (w1 - w0))
                s = jnp.sum(jnp.where(mask, x, 0), axis=-1,
                            dtype=jnp.float32)                   # (Bt, Ct) f32
                m = jnp.max(jnp.where(mask, x, neg), axis=-1)    # (Bt, Ct)
                out_ref[:, k, :] = (s * inv_cnt).astype(out_ref.dtype)
                out_ref[:, K + k, :] = m.astype(out_ref.dtype)
                k += 1


# Per input block budget (double-buffered by the pipeline => <= 32 MiB live),
# well under the 48 MiB scoped limit we request (v7x has 64 MiB physical VMEM).
_BLOCK_BUDGET_BYTES = 16 * 1024 * 1024
_VMEM_LIMIT_BYTES = 48 * 1024 * 1024


def _round_up(v, m):
    return -(-v // m) * m


def _select_tiles(N, C, HW, itemsize):
    """Pick (batch tile, channel tile) so the *padded* input block fits VMEM."""
    sub = max(1, 32 // itemsize)          # sublane pack: f32->8, bf16->16, i8->32
    lanes = _round_up(HW, 128)

    def padded_bytes(bt, ct):
        return bt * _round_up(ct, sub) * lanes * itemsize

    # Channel tile: either full C, or a multiple of 128 dividing C (keeps the
    # lane-dense output block legal).
    ct = C
    if padded_bytes(1, C) > _BLOCK_BUDGET_BYTES and C % 128 == 0:
        cand = C
        while cand > 128 and padded_bytes(1, cand) > _BLOCK_BUDGET_BYTES:
            nxt = cand // 2
            if nxt % 128 == 0 and C % nxt == 0:
                cand = nxt
            else:
                break
        ct = cand
    # TODO(synk): if C is large, not a multiple of 128, and a (1, C, HW) block
    # still exceeds the budget, split H*W across a third grid axis instead.

    # Batch tile: largest divisor of N whose padded block fits the budget.
    bt = 1
    for cand in range(N, 0, -1):
        if N % cand == 0 and padded_bytes(cand, ct) <= _BLOCK_BUDGET_BYTES:
            bt = cand
            break

    # Megacore coverage: avoid a degenerate 1-step grid (v7x has 2 TCs).
    if (N // bt) * (C // ct) == 1:
        if N > 1:
            for cand in range(N // 2, 0, -1):
                if N % cand == 0:
                    bt = cand
                    break
        elif ct == C and C % 128 == 0 and C // 128 >= 2:
            for cand in range(C // 2, 127, -1):
                if cand % 128 == 0 and C % cand == 0:
                    ct = cand
                    break
    return bt, ct


def adaptive_concat_pool2d(x, output_size=(1, 1)):
    """Pallas equivalent of AdaptiveConcatPool2d(output_size)(x), NCHW layout."""
    if isinstance(output_size, int):
        oh = ow = output_size
    else:
        oh, ow = output_size
    N, C, H, W = x.shape
    HW = H * W
    K = oh * ow
    itemsize = x.dtype.itemsize

    x_flat = x.reshape(N, C, HW)                      # free contiguous reshape
    bt, ct = _select_tiles(N, C, HW, itemsize)

    kernel = functools.partial(_concat_pool_kernel, H=H, W=W, oh=oh, ow=ow)

    out_flat = pl.pallas_call(
        kernel,
        out_shape=jax.ShapeDtypeStruct((N, 2 * K, C), x.dtype),
        grid=(N // bt, C // ct),
        in_specs=[pl.BlockSpec((bt, ct, HW), lambda n, c: (n, c, 0))],
        out_specs=pl.BlockSpec((bt, 2 * K, ct), lambda n, c: (n, 0, c)),
        compiler_params=pltpu.CompilerParams(
            dimension_semantics=("parallel", "parallel"),
            vmem_limit_bytes=_VMEM_LIMIT_BYTES,
        ),
        cost_estimate=pl.CostEstimate(
            flops=2 * N * C * HW,
            transcendentals=0,
            bytes_accessed=N * C * HW * itemsize + N * 2 * K * C * itemsize,
        ),
    )(x_flat)

    # Tiny layout fixup outside the kernel: (N, 2K, C) -> (N, 2C, oh, ow).
    avg = jnp.transpose(out_flat[:, :K, :], (0, 2, 1)).reshape(N, C, oh, ow)
    mx = jnp.transpose(out_flat[:, K:, :], (0, 2, 1)).reshape(N, C, oh, ow)
    return jnp.concatenate([avg, mx], axis=1)


def _reference(x, output_size):
    """Pure-JAX reference of AdaptiveAvg/MaxPool2d + concat (for checking)."""
    if isinstance(output_size, int):
        oh = ow = output_size
    else:
        oh, ow = output_size
    N, C, H, W = x.shape
    avg = jnp.zeros((N, C, oh, ow), x.dtype)
    mx = jnp.zeros((N, C, oh, ow), x.dtype)
    for i, (h0, h1) in enumerate(_adaptive_bins(H, oh)):
        for j, (w0, w1) in enumerate(_adaptive_bins(W, ow)):
            win = x[:, :, h0:h1, w0:w1]
            avg = avg.at[:, :, i, j].set(
                jnp.mean(win.astype(jnp.float32), axis=(2, 3)).astype(x.dtype)
            )
            mx = mx.at[:, :, i, j].set(jnp.max(win, axis=(2, 3)))
    return jnp.concatenate([avg, mx], axis=1)


if __name__ == "__main__":
    key = jax.random.PRNGKey(0)
    x = jax.random.normal(key, (2, 4, 16, 16), dtype=jnp.float32)

    # Global concat-pool (the usual CNN-classifier configuration).
    out1 = adaptive_concat_pool2d(x, output_size=(1, 1))
    jax.block_until_ready(out1)
    assert out1.shape == (2, 8, 1, 1)
    ref1 = _reference(x, (1, 1))
    assert jnp.allclose(out1, ref1, atol=1e-5, rtol=1e-5)

    # Uneven-bin case exercising the general masked-window path (16 -> 3 bins).
    out2 = adaptive_concat_pool2d(x, output_size=(3, 3))
    jax.block_until_ready(out2)
    assert out2.shape == (2, 8, 3, 3)
    ref2 = _reference(x, (3, 3))
    assert jnp.allclose(out2, ref2, atol=1e-5, rtol=1e-5)

    print("KERNEL_OK")
</pallas_src>

<mosaic_0001>
module attributes {stable_mosaic.version = 11 : i64} {
  func.func @_concat_pool_kernel(%arg0: i32, %arg1: i32, %arg2: memref<1x4x256xf32, #tpu.memory_space<vmem>>, %arg3: memref<1x2x4xf32, #tpu.memory_space<vmem>>) attributes {dimension_semantics = [#tpu.dimension_semantics<parallel>, #tpu.dimension_semantics<parallel>], iteration_bounds = array<i64: 2, 1>, scalar_prefetch = 0 : i64, scratch_operands = 0 : i64, tpu.core_type = #tpu.core_type<tc>, window_params = [{transform_indices = @transform_0, window_bounds = array<i64: 1, 4, 256>}, {transform_indices = @transform_1, window_bounds = array<i64: 1, 2, 4>}]} {
    %c0 = arith.constant 0 : index
    %c0_0 = arith.constant 0 : index
    %c0_1 = arith.constant 0 : index
    %0 = vector.load %arg2[%c0, %c0_0, %c0_1] : memref<1x4x256xf32, #tpu.memory_space<vmem>>, vector<1x4x256xf32>
    %cst = arith.constant dense<0.000000e+00> : vector<1x4xf32>
    %1 = vector.multi_reduction <add>, %0, %cst [2] : vector<1x4x256xf32> to vector<1x4xf32>
    %cst_2 = arith.constant dense<0xFF800000> : vector<1x4xf32>
    %2 = vector.multi_reduction <maximumf>, %0, %cst_2 [2] : vector<1x4x256xf32> to vector<1x4xf32>
    %cst_3 = arith.constant 3.906250e-03 : f32
    %3 = vector.broadcast %cst_3 : f32 to vector<1x4xf32>
    %4 = arith.mulf %1, %3 : vector<1x4xf32>
    %c0_4 = arith.constant 0 : index
    %c0_5 = arith.constant 0 : index
    %c0_6 = arith.constant 0 : index
    %5 = vector.load %arg3[%c0_4, %c0_5, %c0_6] : memref<1x2x4xf32, #tpu.memory_space<vmem>>, vector<1x1x4xf32>
    %6 = vector.shape_cast %5 : vector<1x1x4xf32> to vector<1x4xf32>
    %7 = vector.shape_cast %4 : vector<1x4xf32> to vector<1x1x4xf32>
    tpu.vector_store %arg3[%c0_4, %c0_5, %c0_6], %7 {strides = array<i32>} : memref<1x2x4xf32, #tpu.memory_space<vmem>>, vector<1x1x4xf32>,
    %c0_7 = arith.constant 0 : index
    %c1 = arith.constant 1 : index
    %c0_8 = arith.constant 0 : index
    %8 = vector.load %arg3[%c0_7, %c1, %c0_8] : memref<1x2x4xf32, #tpu.memory_space<vmem>>, vector<1x1x4xf32>
    %9 = vector.shape_cast %8 : vector<1x1x4xf32> to vector<1x4xf32>
    %10 = vector.shape_cast %2 : vector<1x4xf32> to vector<1x1x4xf32>
    tpu.vector_store %arg3[%c0_7, %c1, %c0_8], %10 {strides = array<i32>} : memref<1x2x4xf32, #tpu.memory_space<vmem>>, vector<1x1x4xf32>,
    return
  }
  func.func @transform_0(%arg0: i32, %arg1: i32) -> (i32, i32, i32) {
    %c0_i32 = arith.constant 0 : i32
    %c0_i32_0 = arith.constant 0 : i32
    return %arg0, %arg1, %c0_i32 : i32, i32, i32
  }
  func.func @transform_1(%arg0: i32, %arg1: i32) -> (i32, i32, i32) {
    %c0_i32 = arith.constant 0 : i32
    %c0_i32_0 = arith.constant 0 : i32
    return %arg0, %c0_i32, %arg1 : i32, i32, i32
  }
}

</mosaic_0001>

<llo_original>
// kernel: tpu_custom_call.1
$region0: #{tpu_custom_call.1}
  #allocation0 [shape = 'u32[]', space=smem, size = 0x4, offset = 0x4, fixed_abs, tag = 'smem constant byte address 0x4 - core index']
  #allocation1 [shape = 'u32[144,128]{1,0:T(1,128)}', space=vmem, size = 0x12000, scoped, tag = 'internal scratch']
  %s0 = inlined_call_operand.hbm [shape: f32[2,4,256], index: 0, kind: input, shape index: {}]
  %s1 = inlined_call_operand.hbm [shape: f32[2,2,4], index: 1, kind: output, shape index: {}]
  %s2 = sld [smem:[#allocation0]]
  $region41: #{tpu_custom_call.1} parent=0
    _
  %s4 = ssub.s32 1, %s2
  %s5 = scalar_select 0, %s4, %s2
  $region1: #{tpu_custom_call.1} parent=0
    #allocation2 [shape = 'u8[8192]{0}', space=vmem, size = 0x2000, scoped, tag = 'input window, operand 0']
    #allocation3 [shape = 's32[2]{0}', space=sflag, size = 0x8, scoped, tag = 'scoped memory for tpu_custom_call.1']
    #allocation4 [shape = 's32[2]{0}', space=sflag, size = 0x8, scoped, tag = 'scoped memory for tpu_custom_call.1']
    #allocation5 [shape = 'u8[2048]{0}', space=vmem, size = 0x800, scoped, tag = 'output window, operand 0']
    %6 = vsyncpa [#allocation3], 0
    %s7 = scalar_lea.sflag [#allocation3], 1
    %8 = vsyncpa %s7, 0
    %9 = vsyncpa [#allocation4], 0
    %s10 = scalar_lea.sflag [#allocation4], 1
    %11 = vsyncpa %s10, 0
    loop: start=0, step=1, limit=4
    $region2: #{tpu_custom_call.1} parent=1 // loop_pre_header
      _
    $region3: #{tpu_custom_call.1} parent=1 // loop_header
      %s13 = sphi 0, %s17
      %p14 = scmp.ge.s32.totalorder %s13, 4
      %s20 = sphi 0, %s32
      %s21 = sphi 0, %s28
      %s22 = sphi 0, %s20
      %s23 = sphi 0, %s21
      %s24 = sphi 0, %s22
      %s25 = sphi 0, %s23
      %s37 = sphi 0, %s39
      %s40 = sphi 0, %s37
      %s41 = sphi 0, %s40
      %s57 = sphi 0, %s41
      %s65 = sphi 0, %s67
      %s68 = sphi 0, %s65
      %s69 = sphi 0, %s68
      %s85 = sphi 0, %s69
    $region4: #{tpu_custom_call.1} parent=1 // loop_header_branch
      %16 = sbr.rel (%p14) target = $region8
    $region5: #{tpu_custom_call.1} parent=1 // loop_body
      %s18 = ssub.s32 %s13, 1
      %s19 = ssub.s32 %s13, 2
      %s26 = sadd.s32 1, %s21
      %p27 = scmp.ge.s32.totalorder %s26, 1
      %s28 = scalar_select %p27, 0, %s26
      %s29 = sadd.s32 1, %s20
      %s30 = scalar_select %p27, %s29, %s20
      %p31 = scmp.ge.s32.totalorder %s30, 2
      %s32 = scalar_select %p31, 0, %s30
      %s33 = ssub.s32 %s20, %s32
      %s34 = ssub.s32 %s21, %s28
      %s35 = sor.u32 %s33, %s34
      %p36 = scmp.eq.s32.totalorder %s35, 0
      %s38 = sadd.s32 %s37, 1
      %s39 = scalar_select %p36, %s37, %s38
      %p42 = pneg %p36
      %p43 = scmp.eq.s32.totalorder %s13, 1
      %p44 = por %p42, %p43
      %p45 = scmp.ne.s32.totalorder %s37, %s40
      %p46 = scmp.eq.s32.totalorder %s13, 0
      %p47 = por %p45, %p46
      %p48 = scmp.ne.s32.totalorder %s37, %s40
      %p49 = scmp.eq.s32.totalorder %s18, 1
      %p50 = por %p48, %p49
      %p51 = scmp.ne.s32.totalorder %s40, %s41
      %p52 = scmp.eq.s32.totalorder %s18, 0
      %p53 = por %p51, %p52
      %p54 = scmp.ne.s32.totalorder %s40, %s41
      %p55 = scmp.eq.s32.totalorder %s19, 1
      %p56 = por %p54, %p55
      %p58 = scmp.ne.s32.totalorder %s41, %s57
      %p59 = scmp.eq.s32.totalorder %s19, 0
      %p60 = por %p58, %p59
      %s61 = ssub.s32 %s20, %s32
      %s62 = ssub.s32 %s21, %s28
      %s63 = sor.u32 %s61, %s62
      %p64 = scmp.eq.s32.totalorder %s63, 0
      %s66 = sadd.s32 %s65, 1
      %s67 = scalar_select %p64, %s65, %s66
      %p70 = pneg %p64
      %p71 = scmp.eq.s32.totalorder %s13, 1
      %p72 = por %p70, %p71
      %p73 = scmp.ne.s32.totalorder %s65, %s68
      %p74 = scmp.eq.s32.totalorder %s13, 0
      %p75 = por %p73, %p74
      %p76 = scmp.ne.s32.totalorder %s65, %s68
      %p77 = scmp.eq.s32.totalorder %s18, 1
      %p78 = por %p76, %p77
      %p79 = scmp.ne.s32.totalorder %s68, %s69
      %p80 = scmp.eq.s32.totalorder %s18, 0
      %p81 = por %p79, %p80
      %p82 = scmp.ne.s32.totalorder %s68, %s69
      %p83 = scmp.eq.s32.totalorder %s19, 1
      %p84 = por %p82, %p83
      %p86 = scmp.ne.s32.totalorder %s69, %s85
      %p87 = scmp.eq.s32.totalorder %s19, 0
      %p88 = por %p86, %p87
      %p89 = scmp.le.s32.totalorder 1, %s13
      %p90 = scmp.lt.s32.totalorder %s13, 3
      %p91 = pnand %p89, %p90
      %p92 = pneg %p91
      // Predicated region
      $region9: #{tpu_custom_call.1} parent=5 // pred_check
        _
      $region10: #{tpu_custom_call.1} parent=5 // pred_check_branch
        %94 = sbr.rel (%p91) target = $region12
      $region11: #{tpu_custom_call.1} parent=5 // pred_region
        %s95 = ssub.s32 %s13, 1
      $region12: #{tpu_custom_call.1} parent=5 // pred_fallthru
        _
      %p96 = scmp.lt.s32.totalorder %s13, 2
      // Predicated region
      $region13: #{tpu_custom_call.1} parent=5 // pred_check
        %p97 = pneg %p96
      $region14: #{tpu_custom_call.1} parent=5 // pred_check_branch
        %99 = sbr.rel (%p97) target = $region16
      $region15: #{tpu_custom_call.1} parent=5 // pred_region
        // Predicated region
        $region17: #{tpu_custom_call.1} parent=15 // pred_check
          %p100 = pneg %p47
        $region18: #{tpu_custom_call.1} parent=15 // pred_check_branch
          %102 = sbr.rel (%p100) target = $region20
        $region19: #{tpu_custom_call.1} parent=15 // pred_region
          %s103 = sand.u32 %s37, 1
          %s104 = scalar_lea.sflag [#allocation3], %s103
          %s105 = sand.u32 %s37, 1
          %s106 = smul.addr %s105, 8
          %s107 = scalar_lea.vmem [#allocation2], %s106
          %s109 = ssub.s32 128, 128
          %110 = vsyncadd %s104, %s109
          %s111 = smul.addr %s21, 2
          %s112 = smul.addr %s20, 2
          %s113 = sadd.s32 %s111, %s112
          %s114 = smul.addr %s113, 64
          %s115 = scalar_lea.hbm %s0, %s114
          %s117 = sshll.u32 %s107, 4
          %s118 = int_to_ptr.vmem [resolvable:$true] %s117
          %120 = dma.hbm_to_vmem [thread:$0]  %s115, 128, %s118, %s104
        $region20: #{tpu_custom_call.1} parent=15 // pred_fallthru
          _
      $region16: #{tpu_custom_call.1} parent=5 // pred_fallthru
        _
      %p121 = scmp.le.s32.totalorder 1, %s13
      %p122 = scmp.lt.s32.totalorder %s13, 3
      %p123 = pnand %p121, %p122
      %p124 = pneg %p123
      // Predicated region
      $region21: #{tpu_custom_call.1} parent=5 // pred_check
        _
      $region22: #{tpu_custom_call.1} parent=5 // pred_check_branch
        %126 = sbr.rel (%p123) target = $region24
      $region23: #{tpu_custom_call.1} parent=5 // pred_region
        %s127 = ssub.s32 %s13, 1
        %s128 = sand.u32 %s40, 1
        %s129 = scalar_lea.sflag [#allocation3], %s128
        %s130 = sand.u32 %s40, 1
        %s131 = smul.addr %s130, 8
        %s132 = scalar_lea.vmem [#allocation2], %s131
        // Predicated region
        $region25: #{tpu_custom_call.1} parent=23 // pred_check
          %p133 = pneg %p53
        $region26: #{tpu_custom_call.1} parent=23 // pred_check_branch
          %135 = sbr.rel (%p133) target = $region28
        $region27: #{tpu_custom_call.1} parent=23 // pred_region
          %136 = dma.done %s129, 128
        $region28: #{tpu_custom_call.1} parent=23 // pred_fallthru
          _
        %s137 = sand.u32 %s40, 1
        %s138 = scalar_lea.sflag [#allocation3], %s137
        %s139 = sand.u32 %s40, 1
        %s140 = smul.addr %s139, 8
        %s141 = scalar_lea.vmem [#allocation2], %s140
        %p142 = pneg %p53
        %p143 = pneg %p50
        %p144 = pneg %p81
        %p145 = pneg %p78
        %s146 = sand.u32 %s68, 1
        %s147 = scalar_lea.sflag [#allocation4], %s146
        %s148 = sand.u32 %s68, 1
        %s149 = smul.addr %s148, 2
        %s150 = scalar_lea.vmem [#allocation5], %s149
        %v151 = vld [vmem:[%s132] sm:$0xff]
        %v153 = vcombine.high %v151, %v151
        %vm155 = vcmask 1043456
        %v156 = vsel %vm155, %v151, 0.0
        %v157 = vsel %vm155, %v153, 0.0
        %v158 = vadd.f32 %v156, %v157
        %159 = vadd.xlane.f32.xlu0 %v158
        %v160 = vpop.xlane.xlu0 %159
        %v161 = vsel %vm155, %v151, -inf
        %v162 = vsel %vm155, %v153, -inf
        %v163 = vmax.f32 %v161, %v162
        %164 = vmax.xlane.f32.xlu0 %v163
        %v165 = vpop.xlane.xlu0 %164
        %v166 = vmul.f32 %v160, 0.00390625
        %v168 = vlaneseq
        %v169 = vand.u32 %v168, 127
        %v170 = vlaneseq
        %v171 = vshrl.u32 %v170, 7
        %v172 = vsub.s32 %v169, %v171
        %v173 = vrot.slane %v166, %v172
        %vm175 = vcmask 24576
        %176 = vst.msk [vmem:[%s150] sm:$0x1] %vm175, %v173
        %v178 = vlaneseq
        %v179 = vshrl.u32 %v178, 7
        %v180 = vsub.s32 %v169, %v179
        %v181 = vrot.slane %v165, %v180
        %183 = vst.msk [vmem:[%s150 + $0x1] sm:$0x1] %vm175, %v181
        %s184 = sand.u32 %s68, 1
        %s185 = scalar_lea.sflag [#allocation4], %s184
        %s186 = sand.u32 %s68, 1
        %s187 = smul.addr %s186, 2
        %s188 = scalar_lea.vmem [#allocation5], %s187
        // Predicated region
        $region29: #{tpu_custom_call.1} parent=23 // pred_check
          %p189 = pneg %p78
        $region30: #{tpu_custom_call.1} parent=23 // pred_check_branch
          %191 = sbr.rel (%p189) target = $region32
        $region31: #{tpu_custom_call.1} parent=23 // pred_region
          %s193 = ssub.s32 32, 32
          %194 = vsyncadd %s185, %s193
          %s195 = sadd.s32 %s23, %s22
          %s196 = smul.addr %s195, 32
          %s197 = scalar_lea.hbm %s1, %s196
          %s199 = sshll.u32 %s188, 4
          %s200 = int_to_ptr.vmem [resolvable:$true] %s199
          %202 = dma.vmem_to_hbm [thread:$0]  %s200, 32, %s197, %s185
        $region32: #{tpu_custom_call.1} parent=23 // pred_fallthru
          _
      $region24: #{tpu_custom_call.1} parent=5 // pred_fallthru
        _
      %p203 = scmp.le.s32.totalorder 2, %s13
      // Predicated region
      $region33: #{tpu_custom_call.1} parent=5 // pred_check
        %p204 = pneg %p203
      $region34: #{tpu_custom_call.1} parent=5 // pred_check_branch
        %206 = sbr.rel (%p204) target = $region36
      $region35: #{tpu_custom_call.1} parent=5 // pred_region
        %s207 = ssub.s32 %s13, 2
        // Predicated region
        $region37: #{tpu_custom_call.1} parent=35 // pred_check
          %p208 = pneg %p84
        $region38: #{tpu_custom_call.1} parent=35 // pred_check_branch
          %210 = sbr.rel (%p208) target = $region40
        $region39: #{tpu_custom_call.1} parent=35 // pred_region
          %s211 = sand.u32 %s69, 1
          %s212 = scalar_lea.sflag [#allocation4], %s211
          %s213 = sand.u32 %s69, 1
          %s214 = smul.addr %s213, 2
          %s215 = scalar_lea.vmem [#allocation5], %s214
          %216 = dma.done %s212, 32
        $region40: #{tpu_custom_call.1} parent=35 // pred_fallthru
          _
      $region36: #{tpu_custom_call.1} parent=5 // pred_fallthru
        _
    $region6: #{tpu_custom_call.1} parent=1 // loop_footer
      %s17 = sadd.s32 1, %s13
    $region7: #{tpu_custom_call.1} parent=1 // loop_footer_branch
      %12 = sbr.rel target = $region3
    $region8: #{tpu_custom_call.1} parent=1 // loop_exit
      _
    %217 = vsyncpa [#allocation3], 1
    %s218 = scalar_lea.sflag [#allocation3], 1
    %219 = vsyncpa %s218, 1
    %220 = vsyncpa [#allocation4], 1
    %s221 = scalar_lea.sflag [#allocation4], 1
    %222 = vsyncpa %s221, 1

</llo_original>
